<compile_context>
chip_gen: v7x
topology: tpu7x:2x2x1
jax: 0.10.0
libtpu: 0.0.40
codegen_flags: <defaults>
</compile_context>

<pallas_src>
from functools import partial

import jax
import jax.numpy as jnp
from jax.experimental import pallas as pl
from jax.experimental.pallas import tpu as pltpu


def _cdiv(a, b):
    return -(-a // b)


def _round_up(x, m):
    return ((x + m - 1) // m) * m


# ---------------------------------------------------------------------------
# Kernel 1: streaming global-sum pooling over the flattened spatial axis.
#   x block : (B_tile, C, S_tile)   native dtype
#   o block : (B_tile, C) f32       partial sum for this (shard, batch-tile)
# The output block index only depends on (shard, batch-tile), so it stays
# resident in VMEM across the "arbitrary" spatial axis and is the accumulator.
# ---------------------------------------------------------------------------
def _pool_sum_kernel(x_ref, o_ref, *, hw, s_tile, s_blocks_per_shard):
    s = pl.program_id(2)

    @pl.when(s == 0)
    def _():
        o_ref[...] = jnp.zeros_like(o_ref)

    # Logical (unclamped) element offset of this tile along the spatial axis.
    start = (pl.program_id(0) * s_blocks_per_shard + s) * s_tile

    @pl.when(start + s_tile <= hw)           # fully interior tile: plain sum
    def _():
        o_ref[...] += jnp.sum(x_ref[...].astype(jnp.float32), axis=-1)

    @pl.when(start + s_tile > hw)            # ragged tail / clamped duplicate
    def _():
        lane = jax.lax.broadcasted_iota(jnp.int32, (1, 1, s_tile), 2)
        mask = (start + lane) < hw           # OOB lanes (unspecified data) -> 0
        vals = jnp.where(mask, x_ref[...].astype(jnp.float32), 0.0)
        o_ref[...] += jnp.sum(vals, axis=-1)


# ---------------------------------------------------------------------------
# Kernel 2: tiny finalize. Combine shard partial sums, divide by true H*W,
# then fc1 -> ReLU -> fc2 -> sigmoid. Runs once; everything fits in VMEM.
# ---------------------------------------------------------------------------
def _finalize_kernel(p_ref, w1t_ref, w2t_ref, o_ref, *, inv_hw):
    pooled = jnp.sum(p_ref[...], axis=0) * inv_hw                       # (B, C) f32
    h = jnp.maximum(
        jnp.dot(pooled, w1t_ref[...], preferred_element_type=jnp.float32), 0.0)
    y = jnp.dot(h, w2t_ref[...], preferred_element_type=jnp.float32)
    o_ref[...] = jax.nn.sigmoid(y).astype(o_ref.dtype)


def _choose_tiling(B, C, HW, itemsize, *, x_block_bytes, b_target_bytes, lane_cap):
    # ---- batch tile: full B, or a multiple-of-8 divisor of B (never padded) ----
    if B % 8 != 0:
        b_tile = B
    else:
        lanes_one_block = min(_round_up(HW, 128), lane_cap)
        desired = max(8, b_target_bytes // max(1, C * lanes_one_block * itemsize))
        divisors = [d for d in range(8, B + 1, 8) if B % d == 0]
        fits = [d for d in divisors if d >= desired]
        b_tile = min(fits) if fits else B

    # ---- spatial tile: multiple of 128 unless a single block covers all of HW ----
    s_budget = x_block_bytes // (b_tile * C * itemsize)
    s_budget = max(128, (s_budget // 128) * 128)
    s_budget = min(s_budget, lane_cap)
    if HW <= s_budget:
        s_tile, n_s = HW, 1                  # full-dim block: always layout-legal
    else:
        n_s = _cdiv(HW, s_budget)
        s_tile = _round_up(_cdiv(HW, n_s), 128)   # minimize wasted lanes (<128/row)
        n_s = _cdiv(HW, s_tile)
    return b_tile, s_tile, n_s


@partial(jax.jit, static_argnames=("x_block_bytes", "b_target_bytes", "lane_cap"))
def eeu_channel_attention(x, w1, w2, *,
                          x_block_bytes=16 << 20,   # per-step x-block byte target
                          b_target_bytes=8 << 20,   # batch-tile sizing target
                          lane_cap=8192):
    """x: (B, C, H, W) NCHW;  w1: (Cr, C) fc1.weight;  w2: (C, Cr) fc2.weight.
    Returns sigmoid(fc2(relu(fc1(global_avg_pool(x))))) of shape (B, C, 1, 1)."""
    B, C, H, W = x.shape
    Cr = w1.shape[0]
    assert w1.shape == (Cr, C) and w2.shape == (C, Cr)
    HW = H * W
    itemsize = jnp.dtype(x.dtype).itemsize

    b_tile, s_tile, n_s = _choose_tiling(
        B, C, HW, itemsize, x_block_bytes=x_block_bytes,
        b_target_bytes=b_target_bytes, lane_cap=lane_cap)
    b_blocks = B // b_tile

    # Expose >=2 "parallel" grid steps (both v7x TensorCores) whenever the
    # batch axis alone does not.
    num_shards = 2 if (b_blocks < 2 and n_s >= 2) else 1
    spb = _cdiv(n_s, num_shards)             # spatial blocks per shard

    x_flat = x.reshape(B, C, HW)             # minor-dim merge: free under jit

    x_block = b_tile * C * s_tile * itemsize
    vmem_limit = int(2 * x_block + 4 * b_tile * C * 4 + (4 << 20))
    vmem_limit = min(max(vmem_limit, 16 << 20), 48 << 20)   # v7x-safe cap

    pool_kernel = partial(_pool_sum_kernel, hw=HW, s_tile=s_tile,
                          s_blocks_per_shard=spb)

    # Clamp the logical spatial block index so trailing shard steps never DMA
    # fully out of bounds; their contribution is masked to zero in-kernel.
    def x_index_map(shard, b, s):
        return (b, 0, jnp.minimum(shard * spb + s, n_s - 1))

    partials = pl.pallas_call(
        pool_kernel,
        out_shape=jax.ShapeDtypeStruct((num_shards, B, C), jnp.float32),
        grid_spec=pltpu.PrefetchScalarGridSpec(
            num_scalar_prefetch=0,
            grid=(num_shards, b_blocks, spb),
            in_specs=[pl.BlockSpec((b_tile, C, s_tile), x_index_map)],
            out_specs=pl.BlockSpec((None, b_tile, C),
                                   lambda shard, b, s: (shard, b, 0)),
        ),
        compiler_params=pltpu.CompilerParams(
            dimension_semantics=("parallel", "parallel", "arbitrary"),
            vmem_limit_bytes=vmem_limit,
        ),
    )(x_flat)

    # Pre-transpose (and up-cast) the tiny 1x1-conv weights in the wrapper.
    w1t = jnp.transpose(w1).astype(jnp.float32)   # (C, Cr)
    w2t = jnp.transpose(w2).astype(jnp.float32)   # (Cr, C)

    attn = pl.pallas_call(
        partial(_finalize_kernel, inv_hw=float(1.0 / HW)),
        out_shape=jax.ShapeDtypeStruct((B, C), x.dtype),
        grid=(1,),
        in_specs=[pl.BlockSpec((num_shards, B, C), lambda i: (0, 0, 0)),
                  pl.BlockSpec((C, Cr), lambda i: (0, 0)),
                  pl.BlockSpec((Cr, C), lambda i: (0, 0))],
        out_specs=pl.BlockSpec((B, C), lambda i: (0, 0)),
    )(partials, w1t, w2t)

    return attn.reshape(B, C, 1, 1)


def _reference(x, w1, w2):
    pooled = jnp.mean(x.astype(jnp.float32), axis=(2, 3))
    h = jnp.maximum(pooled @ w1.astype(jnp.float32).T, 0.0)
    y = h @ w2.astype(jnp.float32).T
    return jax.nn.sigmoid(y).reshape(x.shape[0], x.shape[1], 1, 1).astype(x.dtype)


if __name__ == "__main__":
    key = jax.random.PRNGKey(0)

    # (B, C, H, W, ratio, tiling-overrides): exercises single full-dim spatial
    # block, HW < 128, multi-block spatial reduction with ragged-tail masking +
    # 2-way spatial sharding (incl. a clamped duplicate block), and batch tiling.
    cases = [
        (2, 32, 16, 16, 8, {}),
        (3, 32, 9, 9, 4, {}),
        (2, 32, 33, 33, 8, dict(lane_cap=512)),              # 3 spatial blocks, 2 shards
        (16, 32, 12, 12, 8, dict(b_target_bytes=1 << 16)),   # b_tile=8 -> 2 batch blocks
    ]

    for idx, (B, C, H, W, ratio, kw) in enumerate(cases):
        Cr = C // ratio
        key, kx, k1, k2 = jax.random.split(key, 4)
        x = jax.random.normal(kx, (B, C, H, W), dtype=jnp.float32)
        w1 = jax.random.normal(k1, (Cr, C), dtype=jnp.float32) * 0.1  # fc1.weight[:, :, 0, 0]
        w2 = jax.random.normal(k2, (C, Cr), dtype=jnp.float32) * 0.1  # fc2.weight[:, :, 0, 0]

        out = eeu_channel_attention(x, w1, w2, **kw)
        out = jax.block_until_ready(out)

        ref = _reference(x, w1, w2)
        assert out.shape == (B, C, 1, 1), (idx, out.shape)
        assert jnp.allclose(out, ref, atol=1e-5, rtol=1e-5), (
            idx, float(jnp.max(jnp.abs(out - ref))))

    print("KERNEL_OK")
</pallas_src>

<mosaic_0001>
module attributes {stable_mosaic.version = 11 : i64} {
  func.func @_finalize_kernel(%arg0: i32, %arg1: memref<1x2x32xf32, #tpu.memory_space<vmem>>, %arg2: memref<32x4xf32, #tpu.memory_space<vmem>>, %arg3: memref<4x32xf32, #tpu.memory_space<vmem>>, %arg4: memref<2x32xf32, #tpu.memory_space<vmem>>) attributes {dimension_semantics = [#tpu.dimension_semantics<arbitrary>], iteration_bounds = array<i64: 1>, scalar_prefetch = 0 : i64, scratch_operands = 0 : i64, tpu.core_type = #tpu.core_type<tc>, window_params = [{pipeline_mode = #tpu.pipeline_mode<synchronous>, transform_indices = @transform_0, window_bounds = array<i64: 1, 2, 32>}, {pipeline_mode = #tpu.pipeline_mode<synchronous>, transform_indices = @transform_1, window_bounds = array<i64: 32, 4>}, {pipeline_mode = #tpu.pipeline_mode<synchronous>, transform_indices = @transform_2, window_bounds = array<i64: 4, 32>}, {pipeline_mode = #tpu.pipeline_mode<synchronous>, transform_indices = @transform_3, window_bounds = array<i64: 2, 32>}]} {
    %c0 = arith.constant 0 : index
    %c0_0 = arith.constant 0 : index
    %c0_1 = arith.constant 0 : index
    %0 = vector.load %arg1[%c0, %c0_0, %c0_1] : memref<1x2x32xf32, #tpu.memory_space<vmem>>, vector<1x2x32xf32>
    %cst = arith.constant dense<0.000000e+00> : vector<2x32xf32>
    %1 = vector.multi_reduction <add>, %0, %cst [0] : vector<1x2x32xf32> to vector<2x32xf32>
    %cst_2 = arith.constant 3.906250e-03 : f32
    %2 = vector.broadcast %cst_2 : f32 to vector<2x32xf32>
    %3 = arith.mulf %1, %2 : vector<2x32xf32>
    %c0_3 = arith.constant 0 : index
    %c0_4 = arith.constant 0 : index
    %4 = vector.load %arg2[%c0_3, %c0_4] : memref<32x4xf32, #tpu.memory_space<vmem>>, vector<32x4xf32>
    %cst_5 = arith.constant dense<0.000000e+00> : vector<2x4xf32>
    %5 = tpu.matmul %3, %4, %cst_5 {dimension_numbers = #tpu.dot_dimension_numbers<[1], [0], [0], [1], [0, 0, 1, 1], [], []>} : vector<2x32xf32>, vector<32x4xf32>, vector<2x4xf32> -> vector<2x4xf32>
    %cst_6 = arith.constant 0.000000e+00 : f32
    %6 = vector.broadcast %cst_6 : f32 to vector<2x4xf32>
    %7 = arith.maximumf %5, %6 : vector<2x4xf32>
    %c0_7 = arith.constant 0 : index
    %c0_8 = arith.constant 0 : index
    %8 = vector.load %arg3[%c0_7, %c0_8] : memref<4x32xf32, #tpu.memory_space<vmem>>, vector<4x32xf32>
    %cst_9 = arith.constant dense<0.000000e+00> : vector<2x32xf32>
    %9 = tpu.matmul %7, %8, %cst_9 {dimension_numbers = #tpu.dot_dimension_numbers<[1], [0], [0], [1], [0, 0, 1, 1], [], []>} : vector<2x4xf32>, vector<4x32xf32>, vector<2x32xf32> -> vector<2x32xf32>
    %10 = arith.negf %9 : vector<2x32xf32>
    %11 = math.exp %10 : vector<2x32xf32>
    %cst_10 = arith.constant 1.000000e+00 : f32
    %12 = vector.broadcast %cst_10 : f32 to vector<2x32xf32>
    %13 = arith.addf %12, %11 : vector<2x32xf32>
    %14 = arith.divf %12, %13 : vector<2x32xf32>
    %c0_11 = arith.constant 0 : index
    %c0_12 = arith.constant 0 : index
    %15 = vector.load %arg4[%c0_11, %c0_12] : memref<2x32xf32, #tpu.memory_space<vmem>>, vector<2x32xf32>
    tpu.vector_store %arg4[%c0_11, %c0_12], %14 {strides = array<i32>} : memref<2x32xf32, #tpu.memory_space<vmem>>, vector<2x32xf32>,
    return
  }
  func.func @transform_0(%arg0: i32) -> (i32, i32, i32) {
    %c0_i32 = arith.constant 0 : i32
    %c0_i32_0 = arith.constant 0 : i32
    %c0_i32_1 = arith.constant 0 : i32
    %c0_i32_2 = arith.constant 0 : i32
    return %c0_i32, %c0_i32_0, %c0_i32_1 : i32, i32, i32
  }
  func.func @transform_1(%arg0: i32) -> (i32, i32) {
    %c0_i32 = arith.constant 0 : i32
    %c0_i32_0 = arith.constant 0 : i32
    %c0_i32_1 = arith.constant 0 : i32
    return %c0_i32, %c0_i32_0 : i32, i32
  }
  func.func @transform_2(%arg0: i32) -> (i32, i32) {
    %c0_i32 = arith.constant 0 : i32
    %c0_i32_0 = arith.constant 0 : i32
    %c0_i32_1 = arith.constant 0 : i32
    return %c0_i32, %c0_i32_0 : i32, i32
  }
  func.func @transform_3(%arg0: i32) -> (i32, i32) {
    %c0_i32 = arith.constant 0 : i32
    %c0_i32_0 = arith.constant 0 : i32
    %c0_i32_1 = arith.constant 0 : i32
    return %c0_i32, %c0_i32_0 : i32, i32
  }
}

module attributes {stable_mosaic.version = 11 : i64} {
  func.func @_pool_sum_kernel(%arg0: i32, %arg1: i32, %arg2: i32, %arg3: memref<2x32x256xf32, #tpu.memory_space<vmem>>, %arg4: memref<1x2x32xf32, #tpu.memory_space<vmem>>) attributes {dimension_semantics = [#tpu.dimension_semantics<parallel>, #tpu.dimension_semantics<parallel>, #tpu.dimension_semantics<arbitrary>], iteration_bounds = array<i64: 1, 1, 1>, scalar_prefetch = 0 : i64, scratch_operands = 0 : i64, tpu.core_type = #tpu.core_type<tc>, window_params = [{transform_indices = @transform_0, window_bounds = array<i64: 2, 32, 256>}, {transform_indices = @transform_1, window_bounds = array<i64: 1, 2, 32>}]} {
    %c0_i32 = arith.constant 0 : i32
    %0 = arith.cmpi eq, %arg2, %c0_i32 : i32
    %1 = arith.extui %0 : i1 to i32
    %c0_i32_0 = arith.constant 0 : i32
    %2 = arith.cmpi ne, %1, %c0_i32_0 : i32
    scf.if %2 {
      %cst = arith.constant 0.000000e+00 : f32
      %14 = vector.broadcast %cst : f32 to vector<2x32xf32>
      %c0 = arith.constant 0 : index
      %c0_7 = arith.constant 0 : index
      %c0_8 = arith.constant 0 : index
      %15 = vector.load %arg4[%c0, %c0_7, %c0_8] : memref<1x2x32xf32, #tpu.memory_space<vmem>>, vector<1x2x32xf32>
      %16 = vector.shape_cast %15 : vector<1x2x32xf32> to vector<2x32xf32>
      %17 = vector.shape_cast %14 : vector<2x32xf32> to vector<1x2x32xf32>
      tpu.vector_store %arg4[%c0, %c0_7, %c0_8], %17 {strides = array<i32>} : memref<1x2x32xf32, #tpu.memory_space<vmem>>, vector<1x2x32xf32>,
    } else {
    }
    %c1_i32 = arith.constant 1 : i32
    %3 = arith.muli %arg0, %c1_i32 : i32
    %4 = arith.addi %3, %arg2 : i32
    %c256_i32 = arith.constant 256 : i32
    %5 = arith.muli %4, %c256_i32 : i32
    %c256_i32_1 = arith.constant 256 : i32
    %6 = arith.addi %5, %c256_i32_1 : i32
    %c256_i32_2 = arith.constant 256 : i32
    %7 = arith.cmpi sle, %6, %c256_i32_2 : i32
    %8 = arith.extui %7 : i1 to i32
    %c0_i32_3 = arith.constant 0 : i32
    %9 = arith.cmpi ne, %8, %c0_i32_3 : i32
    scf.if %9 {
      %c0 = arith.constant 0 : index
      %c0_7 = arith.constant 0 : index
      %c0_8 = arith.constant 0 : index
      %14 = vector.load %arg4[%c0, %c0_7, %c0_8] : memref<1x2x32xf32, #tpu.memory_space<vmem>>, vector<1x2x32xf32>
      %15 = vector.shape_cast %14 : vector<1x2x32xf32> to vector<2x32xf32>
      %c0_9 = arith.constant 0 : index
      %c0_10 = arith.constant 0 : index
      %c0_11 = arith.constant 0 : index
      %16 = vector.load %arg3[%c0_9, %c0_10, %c0_11] : memref<2x32x256xf32, #tpu.memory_space<vmem>>, vector<2x32x256xf32>
      %cst = arith.constant dense<0.000000e+00> : vector<2x32xf32>
      %17 = vector.multi_reduction <add>, %16, %cst [2] : vector<2x32x256xf32> to vector<2x32xf32>
      %18 = arith.addf %15, %17 : vector<2x32xf32>
      %c0_12 = arith.constant 0 : index
      %c0_13 = arith.constant 0 : index
      %c0_14 = arith.constant 0 : index
      %19 = vector.load %arg4[%c0_12, %c0_13, %c0_14] : memref<1x2x32xf32, #tpu.memory_space<vmem>>, vector<1x2x32xf32>
      %20 = vector.shape_cast %19 : vector<1x2x32xf32> to vector<2x32xf32>
      %21 = vector.shape_cast %18 : vector<2x32xf32> to vector<1x2x32xf32>
      tpu.vector_store %arg4[%c0_12, %c0_13, %c0_14], %21 {strides = array<i32>} : memref<1x2x32xf32, #tpu.memory_space<vmem>>, vector<1x2x32xf32>,
    } else {
    }
    %c256_i32_4 = arith.constant 256 : i32
    %10 = arith.addi %5, %c256_i32_4 : i32
    %c256_i32_5 = arith.constant 256 : i32
    %11 = arith.cmpi sgt, %10, %c256_i32_5 : i32
    %12 = arith.extui %11 : i1 to i32
    %c0_i32_6 = arith.constant 0 : i32
    %13 = arith.cmpi ne, %12, %c0_i32_6 : i32
    scf.if %13 {
      %14 = tpu.iota {dimensions = array<i32: 2>} : vector<1x1x256xi32>
      %15 = vector.broadcast %5 : i32 to vector<1x1x256xi32>
      %16 = arith.addi %15, %14 : vector<1x1x256xi32>
      %c256_i32_7 = arith.constant 256 : i32
      %17 = vector.broadcast %c256_i32_7 : i32 to vector<1x1x256xi32>
      %18 = arith.cmpi slt, %16, %17 : vector<1x1x256xi32>
      %c0 = arith.constant 0 : index
      %c0_8 = arith.constant 0 : index
      %c0_9 = arith.constant 0 : index
      %19 = vector.load %arg3[%c0, %c0_8, %c0_9] : memref<2x32x256xf32, #tpu.memory_space<vmem>>, vector<2x32x256xf32>
      %cst = arith.constant 0.000000e+00 : f32
      %20 = vector.shape_cast %18 : vector<1x1x256xi1> to vector<1x1x256xi1>
      %21 = vector.broadcast %20 : vector<1x1x256xi1> to vector<2x32x256xi1>
      %22 = vector.broadcast %cst : f32 to vector<2x32x256xf32>
      %23 = arith.select %21, %19, %22 : vector<2x32x256xi1>, vector<2x32x256xf32>
      %c0_10 = arith.constant 0 : index
      %c0_11 = arith.constant 0 : index
      %c0_12 = arith.constant 0 : index
      %24 = vector.load %arg4[%c0_10, %c0_11, %c0_12] : memref<1x2x32xf32, #tpu.memory_space<vmem>>, vector<1x2x32xf32>
      %25 = vector.shape_cast %24 : vector<1x2x32xf32> to vector<2x32xf32>
      %cst_13 = arith.constant dense<0.000000e+00> : vector<2x32xf32>
      %26 = vector.multi_reduction <add>, %23, %cst_13 [2] : vector<2x32x256xf32> to vector<2x32xf32>
      %27 = arith.addf %25, %26 : vector<2x32xf32>
      %c0_14 = arith.constant 0 : index
      %c0_15 = arith.constant 0 : index
      %c0_16 = arith.constant 0 : index
      %28 = vector.load %arg4[%c0_14, %c0_15, %c0_16] : memref<1x2x32xf32, #tpu.memory_space<vmem>>, vector<1x2x32xf32>
      %29 = vector.shape_cast %28 : vector<1x2x32xf32> to vector<2x32xf32>
      %30 = vector.shape_cast %27 : vector<2x32xf32> to vector<1x2x32xf32>
      tpu.vector_store %arg4[%c0_14, %c0_15, %c0_16], %30 {strides = array<i32>} : memref<1x2x32xf32, #tpu.memory_space<vmem>>, vector<1x2x32xf32>,
    } else {
    }
    return
  }
  func.func @transform_0(%arg0: i32, %arg1: i32, %arg2: i32) -> (i32, i32, i32) {
    %c1_i32 = arith.constant 1 : i32
    %0 = arith.muli %arg0, %c1_i32 : i32
    %1 = arith.addi %0, %arg2 : i32
    %c0_i32 = arith.constant 0 : i32
    %2 = arith.minsi %1, %c0_i32 : i32
    %c0_i32_0 = arith.constant 0 : i32
    %c0_i32_1 = arith.constant 0 : i32
    return %arg1, %c0_i32_0, %2 : i32, i32, i32
  }
  func.func @transform_1(%arg0: i32, %arg1: i32, %arg2: i32) -> (i32, i32, i32) {
    %c0_i32 = arith.constant 0 : i32
    %c0_i32_0 = arith.constant 0 : i32
    return %arg0, %arg1, %c0_i32 : i32, i32, i32
  }
}

</mosaic_0001>

<llo_original>
// kernel: eeu_channel_attention.2
$region0: #{eeu_channel_attention.2}
  #allocation0 [shape = 'u32[]', space=smem, size = 0x4, offset = 0x4, fixed_abs, tag = 'smem constant byte address 0x4 - core index']
  #allocation1 [shape = 'u32[144,128]{1,0:T(1,128)}', space=vmem, size = 0x12000, scoped, tag = 'internal scratch']
  %s0 = inlined_call_operand.vmem [shape: f32[2,32,256], index: 0, kind: input, shape index: {}]
  %s1 = inlined_call_operand.vmem [shape: f32[1,2,32], index: 1, kind: output, shape index: {}]
  %s2 = sld [smem:[#allocation0]]
  $region26: #{eeu_channel_attention.2} parent=0
    _
  %s4 = ssub.s32 1, %s2
  %s5 = scalar_select 0, %s4, %s2
  // Predicated region
  $region2: #{eeu_channel_attention.2} parent=0 // pred_check
    _
  $region3: #{eeu_channel_attention.2} parent=0 // pred_check_branch
    %7 = sbr.rel (0) target = $region5
  $region4: #{eeu_channel_attention.2} parent=0 // pred_region
    %s8 = sadd.s32 0, 0
    %p9 = scmp.lt.s32.totalorder %s8, 0
    %s10 = scalar_select %p9, %s8, 0
    %s11 = smul.u32 2, %s10
    %p12 = scmp.lt.s32.totalorder %s11, 1
    %s13 = scalar_select %p12, %s11, 1
    %s14 = smul.addr %s13, 8
    %s15 = scalar_lea.vmem %s0, %s14
    %s16 = sadd.s32 0, 0
    %p17 = scmp.lt.s32.totalorder %s16, 0
    %s18 = scalar_select %p17, %s16, 0
    %s19 = smul.u32 2, %s18
  $region5: #{eeu_channel_attention.2} parent=0 // pred_fallthru
    _
  %s20 = sadd.s32 0, 0
  %p21 = scmp.lt.s32.totalorder %s20, 0
  %s22 = scalar_select %p21, %s20, 0
  %s23 = smul.u32 2, %s22
  %p24 = scmp.lt.s32.totalorder %s23, 1
  %s25 = scalar_select %p24, %s23, 1
  %s26 = smul.addr %s25, 8
  %s27 = scalar_lea.vmem %s0, %s26
  %s28 = sadd.s32 0, 0
  %p29 = scmp.lt.s32.totalorder %s28, 0
  %s30 = scalar_select %p29, %s28, 0
  %s31 = smul.u32 2, %s30
  %p32 = scmp.lt.s32.totalorder %s31, 1
  %s33 = scalar_select %p32, %s31, 1
  %s34 = smul.addr %s33, 8
  %s35 = scalar_lea.vmem %s0, %s34
  %s36 = sadd.s32 0, 0
  %p37 = scmp.lt.s32.totalorder %s36, 0
  %s38 = scalar_select %p37, %s36, 0
  %s39 = smul.u32 2, %s38
  %p40 = scmp.eq.s32.totalorder 0, 0
  // Predicated region
  $region6: #{eeu_channel_attention.2} parent=0 // pred_check
    %p41 = pneg %p40
  $region7: #{eeu_channel_attention.2} parent=0 // pred_check_branch
    %43 = sbr.rel (%p41) target = $region9
  $region8: #{eeu_channel_attention.2} parent=0 // pred_region
    %vm44 = vcmask 254976
    %45 = vst.msk [vmem:[%s1] sm:$0x3] %vm44, 0.0
  $region9: #{eeu_channel_attention.2} parent=0 // pred_fallthru
    _
  %s46 = sadd.s32 0, 0
  %s47 = smul.u32 %s46, 256
  %s48 = sadd.s32 %s47, 256
  %p49 = scmp.le.s32.totalorder %s48, 256
  // Predicated region
  $region10: #{eeu_channel_attention.2} parent=0 // pred_check
    %p50 = pneg %p49
  $region11: #{eeu_channel_attention.2} parent=0 // pred_check_branch
    %52 = sbr.rel (%p50) target = $region13
  $region12: #{eeu_channel_attention.2} parent=0 // pred_region
    %v53 = vld [vmem:[%s1] sm:$0x3]
    %v54 = vld [vmem:[%s35] sm:$0xff]
    %v55 = vld [vmem:[%s35 + $0x8] sm:$0xff]
    %v56 = vld [vmem:[%s35 + $0x10] sm:$0xff]
    %v57 = vld [vmem:[%s35 + $0x18] sm:$0xff]
    %v58 = vld [vmem:[%s35 + $0x20] sm:$0xff]
    %v59 = vld [vmem:[%s35 + $0x28] sm:$0xff]
    %v60 = vld [vmem:[%s35 + $0x30] sm:$0xff]
    %v61 = vld [vmem:[%s35 + $0x38] sm:$0xff]
    %v62 = vld [vmem:[%s35 + $0x40] sm:$0xff]
    %v63 = vld [vmem:[%s35 + $0x48] sm:$0xff]
    %v64 = vld [vmem:[%s35 + $0x50] sm:$0xff]
    %v65 = vld [vmem:[%s35 + $0x58] sm:$0xff]
    %v66 = vld [vmem:[%s35 + $0x60] sm:$0xff]
    %v67 = vld [vmem:[%s35 + $0x68] sm:$0xff]
    %v68 = vld [vmem:[%s35 + $0x70] sm:$0xff]
    %v69 = vld [vmem:[%s35 + $0x78] sm:$0xff]
    %v70 = vadd.f32 %v54, %v55
    %71 = vadd.xlane.f32.xlu0 %v70
    %v72 = vpop.xlane.xlu0 %71
    %v73 = vadd.f32 %v56, %v57
    %74 = vadd.xlane.f32.xlu0 %v73
    %v75 = vpop.xlane.xlu0 %74
    %v76 = vadd.f32 %v58, %v59
    %77 = vadd.xlane.f32.xlu0 %v76
    %v78 = vpop.xlane.xlu0 %77
    %v79 = vadd.f32 %v60, %v61
    %80 = vadd.xlane.f32.xlu0 %v79
    %v81 = vpop.xlane.xlu0 %80
    %v82 = vadd.f32 %v62, %v63
    %83 = vadd.xlane.f32.xlu0 %v82
    %v84 = vpop.xlane.xlu0 %83
    %v85 = vadd.f32 %v64, %v65
    %86 = vadd.xlane.f32.xlu0 %v85
    %v87 = vpop.xlane.xlu0 %86
    %v88 = vadd.f32 %v66, %v67
    %89 = vadd.xlane.f32.xlu0 %v88
    %v90 = vpop.xlane.xlu0 %89
    %v91 = vadd.f32 %v68, %v69
    %92 = vadd.xlane.f32.xlu0 %v91
    %v93 = vpop.xlane.xlu0 %92
    %v102 = vlaneseq
    %v103 = vand.u32 %v102, 127
    %v104 = vlaneseq
    %v105 = vshrl.u32 %v104, 7
    %v106 = vsub.s32 %v103, %v105
    %v107 = vrot.slane %v72, %v106
    %v108 = vadd.s32 %v103, 4294967288
    %v109 = vlaneseq
    %v110 = vshrl.u32 %v109, 7
    %v111 = vsub.s32 %v108, %v110
    %v112 = vrot.slane %v75, %v111
    %vm113 = vcmask 130112
    %v114 = vsel %vm113, %v112, %v107
    %v115 = vadd.s32 %v103, 4294967280
    %v116 = vlaneseq
    %v117 = vshrl.u32 %v116, 7
    %v118 = vsub.s32 %v115, %v117
    %v119 = vrot.slane %v78, %v118
    %vm120 = vcmask 195712
    %v121 = vsel %vm120, %v119, %v114
    %v122 = vadd.s32 %v103, 4294967272
    %v123 = vlaneseq
    %v124 = vshrl.u32 %v123, 7
    %v125 = vsub.s32 %v122, %v124
    %v126 = vrot.slane %v81, %v125
    %vm127 = vcmask 261312
    %v128 = vsel %vm127, %v126, %v121
    %v129 = vlaneseq
    %v130 = vshrl.u32 %v129, 7
    %v131 = vsub.s32 %v103, %v130
    %v132 = vrot.slane %v84, %v131
    %v133 = vlaneseq
    %v134 = vshrl.u32 %v133, 7
    %v135 = vsub.s32 %v108, %v134
    %v136 = vrot.slane %v87, %v135
    %v137 = vsel %vm113, %v136, %v132
    %v138 = vlaneseq
    %v139 = vshrl.u32 %v138, 7
    %v140 = vsub.s32 %v115, %v139
    %v141 = vrot.slane %v90, %v140
    %v142 = vsel %vm120, %v141, %v137
    %v143 = vlaneseq
    %v144 = vshrl.u32 %v143, 7
    %v145 = vsub.s32 %v122, %v144
    %v146 = vrot.slane %v93, %v145
    %v147 = vsel %vm127, %v146, %v142
    %vm148 = vcmask 1041409
    %v149 = vsel %vm148, %v147, %v128
    %v151 = vadd.f32 %v53, %v149
    %vm152 = vcmask 254976
    %153 = vst.msk [vmem:[%s1] sm:$0x3] %vm152, %v151
  $region13: #{eeu_channel_attention.2} parent=0 // pred_fallthru
    _
  %p154 = scmp.gt.s32.totalorder %s48, 256
  // Predicated region
  $region14: #{eeu_channel_attention.2} parent=0 // pred_check
    %p155 = pneg %p154
  $region15: #{eeu_channel_attention.2} parent=0 // pred_check_branch
    %157 = sbr.rel (%p155) target = $region17
  $region16: #{eeu_channel_attention.2} parent=0 // pred_region
    %v158 = vlaneseq
    %v159 = vand.u32 %v158, 127
    %v160 = vadd.s32 %v159, 128
    %v161 = vstv %s47
    %v162 = vadd.s32 %v161, %v159
    %v163 = vadd.s32 %v161, %v160
    %vm164 = vcmp.lt.s32.totalorder %v162, 256
    %vm165 = vcmp.lt.s32.totalorder %v163, 256
    %v166 = vld [vmem:[%s35] sm:$0xff]
    %v167 = vld [vmem:[%s35 + $0x8] sm:$0xff]
    %v168 = vld [vmem:[%s35 + $0x10] sm:$0xff]
    %v169 = vld [vmem:[%s35 + $0x18] sm:$0xff]
    %v170 = vld [vmem:[%s35 + $0x20] sm:$0xff]
    %v171 = vld [vmem:[%s35 + $0x28] sm:$0xff]
    %v172 = vld [vmem:[%s35 + $0x30] sm:$0xff]
    %v173 = vld [vmem:[%s35 + $0x38] sm:$0xff]
    %v174 = vld [vmem:[%s35 + $0x40] sm:$0xff]
    %v175 = vld [vmem:[%s35 + $0x48] sm:$0xff]
    %v176 = vld [vmem:[%s35 + $0x50] sm:$0xff]
    %v177 = vld [vmem:[%s35 + $0x58] sm:$0xff]
    %v178 = vld [vmem:[%s35 + $0x60] sm:$0xff]
    %v179 = vld [vmem:[%s35 + $0x68] sm:$0xff]
    %v180 = vld [vmem:[%s35 + $0x70] sm:$0xff]
    %v181 = vld [vmem:[%s35 + $0x78] sm:$0xff]
    %v182 = vsel %vm164, 1, 0
    %v183 = vsel %vm165, 1, 0
    %vm184 = vcmp.eq.s32.totalorder %v182, 1
    %vm185 = vcmp.eq.s32.totalorder %v183, 1
    %v186 = vsel %vm184, %v166, 0.0
    %v187 = vsel %vm185, %v167, 0.0
    %v188 = vsel %vm184, %v168, 0.0
    %v189 = vsel %vm185, %v169, 0.0
    %v190 = vsel %vm184, %v170, 0.0
    %v191 = vsel %vm185, %v171, 0.0
    %v192 = vsel %vm184, %v172, 0.0
    %v193 = vsel %vm185, %v173, 0.0
    %v194 = vsel %vm184, %v174, 0.0
    %v195 = vsel %vm185, %v175, 0.0
    %v196 = vsel %vm184, %v176, 0.0
    %v197 = vsel %vm185, %v177, 0.0
    %v198 = vsel %vm184, %v178, 0.0
    %v199 = vsel %vm185, %v179, 0.0
    %v200 = vsel %vm184, %v180, 0.0
    %v201 = vsel %vm185, %v181, 0.0
    %v202 = vld [vmem:[%s1] sm:$0x3]
    %v203 = vadd.f32 %v186, %v187
    %204 = vadd.xlane.f32.xlu0 %v203
    %v205 = vpop.xlane.xlu0 %204
    %v206 = vadd.f32 %v188, %v189
    %207 = vadd.xlane.f32.xlu0 %v206
    %v208 = vpop.xlane.xlu0 %207
    %v209 = vadd.f32 %v190, %v191
    %210 = vadd.xlane.f32.xlu0 %v209
    %v211 = vpop.xlane.xlu0 %210
    %v212 = vadd.f32 %v192, %v193
    %213 = vadd.xlane.f32.xlu0 %v212
    %v214 = vpop.xlane.xlu0 %213
    %v215 = vadd.f32 %v194, %v195
    %216 = vadd.xlane.f32.xlu0 %v215
    %v217 = vpop.xlane.xlu0 %216
    %v218 = vadd.f32 %v196, %v197
    %219 = vadd.xlane.f32.xlu0 %v218
    %v220 = vpop.xlane.xlu0 %219
    %v221 = vadd.f32 %v198, %v199
    %222 = vadd.xlane.f32.xlu0 %v221
    %v223 = vpop.xlane.xlu0 %222
    %v224 = vadd.f32 %v200, %v201
    %225 = vadd.xlane.f32.xlu0 %v224
    %v226 = vpop.xlane.xlu0 %225
    %v235 = vlaneseq
    %v236 = vshrl.u32 %v235, 7
    %v237 = vsub.s32 %v159, %v236
    %v238 = vrot.slane %v205, %v237
    %v239 = vadd.s32 %v159, 4294967288
    %v240 = vlaneseq
    %v241 = vshrl.u32 %v240, 7
    %v242 = vsub.s32 %v239, %v241
    %v243 = vrot.slane %v208, %v242
    %vm244 = vcmask 130112
    %v245 = vsel %vm244, %v243, %v238
    %v246 = vadd.s32 %v159, 4294967280
    %v247 = vlaneseq
    %v248 = vshrl.u32 %v247, 7
    %v249 = vsub.s32 %v246, %v248
    %v250 = vrot.slane %v211, %v249
    %vm251 = vcmask 195712
    %v252 = vsel %vm251, %v250, %v245
    %v253 = vadd.s32 %v159, 4294967272
    %v254 = vlaneseq
    %v255 = vshrl.u32 %v254, 7
    %v256 = vsub.s32 %v253, %v255
    %v257 = vrot.slane %v214, %v256
    %vm258 = vcmask 261312
    %v259 = vsel %vm258, %v257, %v252
    %v260 = vlaneseq
    %v261 = vshrl.u32 %v260, 7
    %v262 = vsub.s32 %v159, %v261
    %v263 = vrot.slane %v217, %v262
    %v264 = vlaneseq
    %v265 = vshrl.u32 %v264, 7
    %v266 = vsub.s32 %v239, %v265
    %v267 = vrot.slane %v220, %v266
    %v268 = vsel %vm244, %v267, %v263
    %v269 = vlaneseq
    %v270 = vshrl.u32 %v269, 7
    %v271 = vsub.s32 %v246, %v270
    %v272 = vrot.slane %v223, %v271
    %v273 = vsel %vm251, %v272, %v268
    %v274 = vlaneseq
    %v275 = vshrl.u32 %v274, 7
    %v276 = vsub.s32 %v253, %v275
    %v277 = vrot.slane %v226, %v276
    %v278 = vsel %vm258, %v277, %v273
    %vm279 = vcmask 1041409
    %v280 = vsel %vm279, %v278, %v259
    %v282 = vadd.f32 %v202, %v280
    %vm283 = vcmask 254976
    %284 = vst.msk [vmem:[%s1] sm:$0x3] %vm283, %v282
  $region17: #{eeu_channel_attention.2} parent=0 // pred_fallthru
    _
  // Predicated region
  $region18: #{eeu_channel_attention.2} parent=0 // pred_check
    _
  $region19: #{eeu_channel_attention.2} parent=0 // pred_check_branch
    %286 = sbr.rel (0) target = $region21
  $region20: #{eeu_channel_attention.2} parent=0 // pred_region
    _
  $region21: #{eeu_channel_attention.2} parent=0 // pred_fallthru
    _
  // Predicated region
  $region22: #{eeu_channel_attention.2} parent=0 // pred_check
    _
  $region23: #{eeu_channel_attention.2} parent=0 // pred_check_branch
    %288 = sbr.rel (0) target = $region25
  $region24: #{eeu_channel_attention.2} parent=0 // pred_region
    _
  $region25: #{eeu_channel_attention.2} parent=0 // pred_fallthru
    _

// kernel: eeu_channel_attention.3
$region0: #{eeu_channel_attention.3}
  #allocation0 [shape = 'u32[]', space=smem, size = 0x4, offset = 0x4, fixed_abs, tag = 'smem constant byte address 0x4 - core index']
  #allocation1 [shape = 'u32[144,128]{1,0:T(1,128)}', space=vmem, size = 0x12000, scoped, tag = 'internal scratch']
  %s0 = inlined_call_operand.vmem [shape: f32[1,2,32], index: 0, kind: input, shape index: {}]
  %s1 = inlined_call_operand.vmem [shape: f32[32,4], index: 1, kind: input, shape index: {}]
  %s2 = inlined_call_operand.vmem [shape: f32[4,32], index: 2, kind: input, shape index: {}]
  %s3 = inlined_call_operand.hbm [shape: f32[2,32], index: 3, kind: output, shape index: {}]
  %s4 = sld [smem:[#allocation0]]
  $region22: #{eeu_channel_attention.3} parent=0
    _
  %s6 = ssub.s32 1, %s4
  %s7 = scalar_select 0, %s6, %s4
  $region1: #{eeu_channel_attention.3} parent=0
    #allocation2 [shape = 'u8[1024]{0}', space=vmem, size = 0x400, scoped, tag = 'output window, operand 0, single buffered']
    #allocation3 [shape = 's32[1]{0}', space=sflag, size = 0x4, scoped, tag = 'scoped memory for eeu_channel_attention.3']
    %8 = vsyncpa [#allocation3], 0
    // Predicated region
    $region2: #{eeu_channel_attention.3} parent=1 // pred_check
      _
    $region3: #{eeu_channel_attention.3} parent=1 // pred_check_branch
      %10 = sbr.rel (0) target = $region5
    $region4: #{eeu_channel_attention.3} parent=1 // pred_region
      _
    $region5: #{eeu_channel_attention.3} parent=1 // pred_fallthru
      _
    // Predicated region
    $region6: #{eeu_channel_attention.3} parent=1 // pred_check
      _
    $region7: #{eeu_channel_attention.3} parent=1 // pred_check_branch
      %12 = sbr.rel (0) target = $region9
    $region8: #{eeu_channel_attention.3} parent=1 // pred_region
      _
    $region9: #{eeu_channel_attention.3} parent=1 // pred_fallthru
      _
    // Predicated region
    $region10: #{eeu_channel_attention.3} parent=1 // pred_check
      _
    $region11: #{eeu_channel_attention.3} parent=1 // pred_check_branch
      %14 = sbr.rel (0) target = $region13
    $region12: #{eeu_channel_attention.3} parent=1 // pred_region
      _
    $region13: #{eeu_channel_attention.3} parent=1 // pred_fallthru
      _
    %v15 = vld [vmem:[%s0] sm:$0x3]
    %v16 = vadd.f32 %v15, 0.0
    %v17 = vmul.f32 %v16, 0.00390625
    %v18 = vld [vmem:[%s1] sm:$0xff]
    %v19 = vld [vmem:[%s1 + $0x8] sm:$0xff]
    %v20 = vld [vmem:[%s1 + $0x10] sm:$0xff]
    %v21 = vld [vmem:[%s1 + $0x18] sm:$0xff]
    %vm22 = vcmask 261120
    %v24 = vsel %vm22, %v17, 0
    %26 = vmatprep.subr.mxu0 0.0
    %27 = vmatpush1.msra.mxu0 %v18
    %28 = vmatprep.subr.mxu0 0.0
    %29 = vmatpush1.msra.mxu0 %v19
    %30 = vmatprep.subr.mxu0 0.0
    %31 = vmatpush1.msra.mxu0 %v20
    %32 = vmatprep.subr.mxu0 0.0
    %33 = vmatpush1.msra.mxu0 %v21
    %34 = vmatprep.subr.mxu0 0.0
    %35 = vmatpush1.msra.mxu0 0.0
    %36 = vmatprep.subr.mxu0 0.0
    %37 = vmatpush1.msra.mxu0 0.0
    %38 = vmatprep.subr.mxu0 0.0
    %39 = vmatpush1.msra.mxu0 0.0
    %40 = vmatprep.subr.mxu0 0.0
    %41 = vmatpush1.msra.mxu0 0.0
    %42 = vmatprep.subr.mxu0 0.0
    %43 = vmatpush1.msra.mxu0 0.0
    %44 = vmatprep.subr.mxu0 0.0
    %45 = vmatpush1.msra.mxu0 0.0
    %46 = vmatprep.subr.mxu0 0.0
    %47 = vmatpush1.msra.mxu0 0.0
    %48 = vmatprep.subr.mxu0 0.0
    %49 = vmatpush1.msra.mxu0 0.0
    %50 = vmatprep.subr.mxu0 0.0
    %51 = vmatpush1.msra.mxu0 0.0
    %52 = vmatprep.subr.mxu0 0.0
    %53 = vmatpush1.msra.mxu0 0.0
    %54 = vmatprep.subr.mxu0 0.0
    %55 = vmatpush1.msra.mxu0 0.0
    %56 = vmatprep.subr.mxu0 0.0
    %57 = vmatpush1.msra.mxu0 0.0
    %58 = vmatprep.subr.mxu0 0.0
    %59 = vmatpush1.msra.mxu0 0.0
    %60 = vmatprep.subr.mxu0 0.0
    %61 = vmatpush1.msra.mxu0 0.0
    %62 = vmatprep.subr.mxu0 0.0
    %63 = vmatpush1.msra.mxu0 0.0
    %64 = vmatprep.subr.mxu0 0.0
    %65 = vmatpush1.msra.mxu0 0.0
    %66 = vmatprep.subr.mxu0 0.0
    %67 = vmatpush1.msra.mxu0 0.0
    %68 = vmatprep.subr.mxu0 0.0
    %69 = vmatpush1.msra.mxu0 0.0
    %70 = vmatprep.subr.mxu0 0.0
    %71 = vmatpush1.msra.mxu0 0.0
    %72 = vmatprep.subr.mxu0 0.0
    %73 = vmatpush1.msra.mxu0 0.0
    %74 = vmatprep.subr.mxu0 0.0
    %75 = vmatpush1.msra.mxu0 0.0
    %76 = vmatprep.subr.mxu0 0.0
    %77 = vmatpush1.msra.mxu0 0.0
    %78 = vmatprep.subr.mxu0 0.0
    %79 = vmatpush1.msra.mxu0 0.0
    %80 = vmatprep.subr.mxu0 0.0
    %81 = vmatpush1.msra.mxu0 0.0
    %82 = vmatprep.subr.mxu0 0.0
    %83 = vmatpush1.msra.mxu0 0.0
    %84 = vmatprep.subr.mxu0 0.0
    %85 = vmatpush1.msra.mxu0 0.0
    %86 = vmatprep.subr.mxu0 0.0
    %87 = vmatpush1.msra.mxu0 0.0
    %88 = vmatprep.subr.mxu0 0.0
    %89 = vmatpush1.msra.mxu0 0.0
    %90 = vmatprep.mubr.f32.mxu0 0.0
    %91 = vmatmul.mubr.f32.gmra.mrb[0].mxu0 %v24
    %v92 = vpop.f32.mrb[0].mxu0
    %v93 = vadd.f32 0.0, %v92
    %v94 = vpop.f32.mrb[0].mxu0
    %95 = vdwg.mxu0
    %v96 = vmax.f32 %v93, 0.0
    %v97 = vld [vmem:[%s2] sm:$0xf]
    %vm98 = vcmask 31744
    %v100 = vsel %vm98, %v96, 0
    %vm102 = vcmask 1043456
    %v104 = vsel %vm102, %v97, 0
    %106 = vmatprep.subr.mxu0 0.0
    %107 = vmatpush1.msra.mxu0 %v104
    %108 = vmatprep.subr.mxu0 0.0
    %109 = vmatpush1.msra.mxu0 0.0
    %110 = vmatprep.subr.mxu0 0.0
    %111 = vmatpush1.msra.mxu0 0.0
    %112 = vmatprep.subr.mxu0 0.0
    %113 = vmatpush1.msra.mxu0 0.0
    %114 = vmatprep.subr.mxu0 0.0
    %115 = vmatpush1.msra.mxu0 0.0
    %116 = vmatprep.subr.mxu0 0.0
    %117 = vmatpush1.msra.mxu0 0.0
    %118 = vmatprep.subr.mxu0 0.0
    %119 = vmatpush1.msra.mxu0 0.0
    %120 = vmatprep.subr.mxu0 0.0
    %121 = vmatpush1.msra.mxu0 0.0
    %122 = vmatprep.subr.mxu0 0.0
    %123 = vmatpush1.msra.mxu0 0.0
    %124 = vmatprep.subr.mxu0 0.0
    %125 = vmatpush1.msra.mxu0 0.0
    %126 = vmatprep.subr.mxu0 0.0
    %127 = vmatpush1.msra.mxu0 0.0
    %128 = vmatprep.subr.mxu0 0.0
    %129 = vmatpush1.msra.mxu0 0.0
    %130 = vmatprep.subr.mxu0 0.0
    %131 = vmatpush1.msra.mxu0 0.0
    %132 = vmatprep.subr.mxu0 0.0
    %133 = vmatpush1.msra.mxu0 0.0
    %134 = vmatprep.subr.mxu0 0.0
    %135 = vmatpush1.msra.mxu0 0.0
    %136 = vmatprep.subr.mxu0 0.0
    %137 = vmatpush1.msra.mxu0 0.0
    %138 = vmatprep.subr.mxu0 0.0
    %139 = vmatpush1.msra.mxu0 0.0
    %140 = vmatprep.subr.mxu0 0.0
    %141 = vmatpush1.msra.mxu0 0.0
    %142 = vmatprep.subr.mxu0 0.0
    %143 = vmatpush1.msra.mxu0 0.0
    %144 = vmatprep.subr.mxu0 0.0
    %145 = vmatpush1.msra.mxu0 0.0
    %146 = vmatprep.subr.mxu0 0.0
    %147 = vmatpush1.msra.mxu0 0.0
    %148 = vmatprep.subr.mxu0 0.0
    %149 = vmatpush1.msra.mxu0 0.0
    %150 = vmatprep.subr.mxu0 0.0
    %151 = vmatpush1.msra.mxu0 0.0
    %152 = vmatprep.subr.mxu0 0.0
    %153 = vmatpush1.msra.mxu0 0.0
    %154 = vmatprep.subr.mxu0 0.0
    %155 = vmatpush1.msra.mxu0 0.0
    %156 = vmatprep.subr.mxu0 0.0
    %157 = vmatpush1.msra.mxu0 0.0
    %158 = vmatprep.subr.mxu0 0.0
    %159 = vmatpush1.msra.mxu0 0.0
    %160 = vmatprep.subr.mxu0 0.0
    %161 = vmatpush1.msra.mxu0 0.0
    %162 = vmatprep.subr.mxu0 0.0
    %163 = vmatpush1.msra.mxu0 0.0
    %164 = vmatprep.subr.mxu0 0.0
    %165 = vmatpush1.msra.mxu0 0.0
    %166 = vmatprep.subr.mxu0 0.0
    %167 = vmatpush1.msra.mxu0 0.0
    %168 = vmatprep.subr.mxu0 0.0
    %169 = vmatpush1.msra.mxu0 0.0
    %170 = vmatprep.mubr.f32.mxu0 0.0
    %171 = vmatmul.mubr.f32.gmra.mrb[0].mxu0 %v100
    %v172 = vpop.f32.mrb[0].mxu0
    %v173 = vadd.f32 0.0, %v172
    %v174 = vpop.f32.mrb[0].mxu0
    %175 = vdwg.mxu0
    %v176 = vxor.u32 %v173, 2147483648
    %v177 = vmul.f32 %v176, 1.442695
    %v178 = vpow.pop %v177
    %v179 = vadd.f32 %v178, 1.0
    %v180 = vrcp.pop %v179
    %v181 = vmul.f32 1.0, %v180
    %vm182 = vcmask 254976
    %183 = vst.msk [vmem:[#allocation2] sm:$0x3] %vm182, %v181
    // Predicated region
    $region14: #{eeu_channel_attention.3} parent=1 // pred_check
      _
    $region15: #{eeu_channel_attention.3} parent=1 // pred_check_branch
      %185 = sbr.rel (0) target = $region17
    $region16: #{eeu_channel_attention.3} parent=1 // pred_region
      %s187 = ssub.s32 32, 32
      %188 = vsyncadd [#allocation3], %s187
      %s190 = sshll.u32 [#allocation2], 4
      %s191 = int_to_ptr.vmem [resolvable:$true] %s190
      %193 = dma.vmem_to_hbm [thread:$0]  %s191, 32, %s3, [#allocation3]
    $region17: #{eeu_channel_attention.3} parent=1 // pred_fallthru
      _
    // Predicated region
    $region18: #{eeu_channel_attention.3} parent=1 // pred_check
      _
    $region19: #{eeu_channel_attention.3} parent=1 // pred_check_branch
      %195 = sbr.rel (0) target = $region21
    $region20: #{eeu_channel_attention.3} parent=1 // pred_region
      %196 = dma.done [#allocation3], 32
    $region21: #{eeu_channel_attention.3} parent=1 // pred_fallthru
      _
    %197 = vsyncpa [#allocation3], 1

</llo_original>
